<compile_context>
chip_gen: v5e
topology: v5e:2x2
jax: 0.10.0
libtpu: 0.0.40
codegen_flags: <defaults>
</compile_context>

<pallas_src>
import jax
import jax.numpy as jnp
from jax.experimental import pallas as pl
from jax.experimental.pallas import tpu as pltpu


_ACTIVATIONS = {
    "relu": lambda y: jnp.maximum(y, 0),
    "leaky_relu": lambda y: jnp.where(y >= 0, y, 0.01 * y),
    "selu": jax.nn.selu,
    "none": lambda y: y,
}

_LANE_CANDIDATES = (1024, 512, 256, 128)   # lane-dense output widths
_SUBLANE_MULT = 32                         # unmasked sublanes for f32/bf16/int8
_MIN_GRID_STEPS = 8                        # hide DMA latency + feed 2 TCs on v7x
_SMALL_INPUT_BYTES = 1 << 20               # below this, fused XLA elementwise wins


def _make_kernel(act_fn):
    def kernel(x_ref, o_ref):
        # blocks == Identity, shortcut == Identity  ->  x + residual == 2 * x
        # (for integer dtypes `* 2` matches x + x semantics, incl. wraparound)
        o_ref[...] = act_fn(x_ref[...] * 2).astype(o_ref.dtype)
    return kernel


def _vmem_physical_bytes():
    try:
        return int(pltpu.get_tpu_info().vmem_capacity_bytes)
    except Exception:
        return 64 * 1024 * 1024  # conservative default: v7x per-TC VMEM


def _tile_geometry(total, itemsize):
    """Pick (lane, rows, tile_rows, grid_steps, vmem_limit) for a lane-dense stream.

    Returns None when no lane multiple of 128 divides `total`; caller then uses
    the plain-jnp path (no padding, no extra HBM copies).
    """
    lane = next((c for c in _LANE_CANDIDATES if total % c == 0), None)
    if lane is None:
        return None
    rows = total // lane

    vmem_limit = (_vmem_physical_bytes() * 3) // 4          # 48 MiB v7x, 96 MiB v5e/v6e
    # 4x tile (in + out, each double-buffered) must sit well under vmem_limit:
    # -> ~6 MiB tiles on v7x, ~8 MiB on v5e/v6e.
    target_bytes = max(2 << 20, min(8 << 20, vmem_limit // 8))

    bytes_per_row = lane * itemsize
    tile_rows = max(_SUBLANE_MULT,
                    (target_bytes // bytes_per_row) // _SUBLANE_MULT * _SUBLANE_MULT)
    # Keep at least _MIN_GRID_STEPS grid steps so the BlockSpec pipeline can
    # overlap prefetch/writeback and v7x's two TensorCores both get rows.
    max_tile = max(_SUBLANE_MULT,
                   pl.cdiv(rows, _MIN_GRID_STEPS) // _SUBLANE_MULT * _SUBLANE_MULT)
    tile_rows = min(tile_rows, max_tile)

    grid_steps = pl.cdiv(rows, tile_rows)   # ragged last block handled by Pallas
    return lane, rows, tile_rows, grid_steps, vmem_limit


def residual_block_forward(x, activation="relu"):
    """x: (N, C, H, W). Returns activation(x + x) with the same shape/dtype."""
    act_fn = _ACTIVATIONS[activation]
    total = int(x.size)
    itemsize = jnp.dtype(x.dtype).itemsize

    geom = None
    if total * itemsize >= _SMALL_INPUT_BYTES:
        geom = _tile_geometry(total, itemsize)
    if geom is None:
        # Small input (launch overhead dominates) or size not a multiple of 128
        # (would need pad/slice copies): plain fused elementwise is optimal.
        return act_fn(x * 2).astype(x.dtype)

    lane, rows, tile_rows, grid_steps, vmem_limit = geom
    x2d = x.reshape(rows, lane)   # contiguous relayout of the same buffer

    out2d = pl.pallas_call(
        _make_kernel(act_fn),
        out_shape=jax.ShapeDtypeStruct((rows, lane), x.dtype),
        grid_spec=pltpu.PrefetchScalarGridSpec(
            num_scalar_prefetch=0,
            grid=(grid_steps,),
            in_specs=[pl.BlockSpec((tile_rows, lane), lambda i: (i, 0))],
            out_specs=pl.BlockSpec((tile_rows, lane), lambda i: (i, 0)),
        ),
        compiler_params=pltpu.CompilerParams(
            # "parallel" lets v7x shard the row axis across its 2 TensorCores
            # (measured no-op on single-TC v5e/v6e).
            # TODO(synk): profile on v7x; if one TC idles, switch this axis to
            # pltpu.CORE_PARALLEL.
            dimension_semantics=("parallel",),
            vmem_limit_bytes=vmem_limit,
        ),
        cost_estimate=pl.CostEstimate(
            flops=2 * total,                                     # mul + activation
            transcendentals=total if activation == "selu" else 0,
            bytes_accessed=2 * total * itemsize,                 # read + write
        ),
    )(x2d)

    return out2d.reshape(x.shape)


if __name__ == "__main__":
    key = jax.random.PRNGKey(0)
    k1, k2 = jax.random.split(key)

    # ResidualBlock(in_channels=4, out_channels=4, activation='relu'):
    # should_apply_shortcut is False, blocks/shortcut are Identity, ReLU at end.
    x_small = jax.random.normal(k1, (2, 4, 16, 16), dtype=jnp.float32)
    out_small = jax.block_until_ready(residual_block_forward(x_small, "relu"))
    ref_small = jnp.maximum(x_small + x_small, 0.0)
    assert out_small.shape == x_small.shape and out_small.dtype == x_small.dtype
    assert jnp.allclose(out_small, ref_small, atol=1e-6), "small-input mismatch"

    # Activation-sized input (1 MiB) that exercises the Pallas path with a
    # multi-step pipelined grid.
    x_big = jax.random.normal(k2, (2, 8, 128, 128), dtype=jnp.float32)
    out_big = jax.block_until_ready(residual_block_forward(x_big, "relu"))
    ref_big = jnp.maximum(x_big + x_big, 0.0)
    assert out_big.shape == x_big.shape and out_big.dtype == x_big.dtype
    assert jnp.allclose(out_big, ref_big, atol=1e-6), "pallas-path mismatch"

    print("KERNEL_OK")
</pallas_src>

<mosaic_0001>
module attributes {stable_mosaic.version = 11 : i64} {
  func.func @kernel(%arg0: i32, %arg1: memref<32x1024xf32, #tpu.memory_space<vmem>>, %arg2: memref<32x1024xf32, #tpu.memory_space<vmem>>) attributes {dimension_semantics = [#tpu.dimension_semantics<parallel>], iteration_bounds = array<i64: 8>, scalar_prefetch = 0 : i64, scratch_operands = 0 : i64, tpu.core_type = #tpu.core_type<tc>, window_params = [{transform_indices = @transform_0, window_bounds = array<i64: 32, 1024>}, {transform_indices = @transform_1, window_bounds = array<i64: 32, 1024>}]} {
    %c0 = arith.constant 0 : index
    %c0_0 = arith.constant 0 : index
    %0 = vector.load %arg1[%c0, %c0_0] : memref<32x1024xf32, #tpu.memory_space<vmem>>, vector<32x1024xf32>
    %cst = arith.constant 2.000000e+00 : f32
    %1 = vector.broadcast %cst : f32 to vector<32x1024xf32>
    %2 = arith.mulf %0, %1 : vector<32x1024xf32>
    %cst_1 = arith.constant 0.000000e+00 : f32
    %3 = vector.broadcast %cst_1 : f32 to vector<32x1024xf32>
    %4 = arith.maximumf %2, %3 : vector<32x1024xf32>
    %c0_2 = arith.constant 0 : index
    %c0_3 = arith.constant 0 : index
    %5 = vector.load %arg2[%c0_2, %c0_3] : memref<32x1024xf32, #tpu.memory_space<vmem>>, vector<32x1024xf32>
    tpu.vector_store %arg2[%c0_2, %c0_3], %4 {strides = array<i32>} : memref<32x1024xf32, #tpu.memory_space<vmem>>, vector<32x1024xf32>,
    return
  }
  func.func @transform_0(%arg0: i32) -> (i32, i32) {
    %c0_i32 = arith.constant 0 : i32
    %c0_i32_0 = arith.constant 0 : i32
    return %arg0, %c0_i32 : i32, i32
  }
  func.func @transform_1(%arg0: i32) -> (i32, i32) {
    %c0_i32 = arith.constant 0 : i32
    %c0_i32_0 = arith.constant 0 : i32
    return %arg0, %c0_i32 : i32, i32
  }
}

</mosaic_0001>

<llo_original>
// kernel: tpu_custom_call.1
$region0: #{tpu_custom_call.1}
  #allocation0 [shape = 'u32[]', space=smem, size = 0x4, offset = 0x4, fixed_abs, tag = 'smem constant byte address 0x4 - core index']
  #allocation1 [shape = 'u32[72,128]{1,0:T(1,128)}', space=vmem, size = 0x9000, scoped, tag = 'internal scratch']
  %s0 = inlined_call_operand.hbm [shape: f32[256,1024], index: 0, kind: input, shape index: {}]
  %s1 = inlined_call_operand.hbm [shape: f32[256,1024], index: 1, kind: output, shape index: {}]
  %s2 = sld [smem:[#allocation0]]
  $region41: #{tpu_custom_call.1} parent=0
    _
  %s4 = ssub.s32 1, %s2
  %s5 = scalar_select 0, %s4, %s2
  $region1: #{tpu_custom_call.1} parent=0
    #allocation2 [shape = 'u8[262144]{0}', space=vmem, size = 0x40000, scoped, tag = 'input window, operand 0']
    #allocation3 [shape = 's32[2]{0}', space=sflag, size = 0x8, scoped, tag = 'scoped memory for tpu_custom_call.1']
    #allocation4 [shape = 's32[2]{0}', space=sflag, size = 0x8, scoped, tag = 'scoped memory for tpu_custom_call.1']
    #allocation5 [shape = 'u8[262144]{0}', space=vmem, size = 0x40000, scoped, tag = 'output window, operand 0']
    %6 = vsyncpa [#allocation3], 0
    %s7 = scalar_lea.sflag [#allocation3], 1
    %8 = vsyncpa %s7, 0
    %9 = vsyncpa [#allocation4], 0
    %s10 = scalar_lea.sflag [#allocation4], 1
    %11 = vsyncpa %s10, 0
    loop: start=0, step=1, limit=10
    $region2: #{tpu_custom_call.1} parent=1 // loop_pre_header
      _
    $region3: #{tpu_custom_call.1} parent=1 // loop_header
      %s13 = sphi 0, %s17
      %p14 = scmp.ge.s32.totalorder %s13, 10
      %s23 = sphi 0, %s25
      %s26 = sphi 0, %s23
      %s27 = sphi 0, %s26
      %s43 = sphi 0, %s27
      %s49 = sphi 0, %s51
      %s52 = sphi 0, %s49
      %s53 = sphi 0, %s52
      %s69 = sphi 0, %s53
    $region4: #{tpu_custom_call.1} parent=1 // loop_header_branch
      %16 = sbr.rel (%p14) target = $region8
    $region5: #{tpu_custom_call.1} parent=1 // loop_body
      %s18 = ssub.s32 %s13, 1
      %s19 = ssub.s32 %s13, 2
      %s20 = sadd.s32 %s13, 1
      %s21 = ssub.s32 %s13, %s20
      %p22 = scmp.eq.s32.totalorder %s21, 0
      %s24 = sadd.s32 %s23, 1
      %s25 = scalar_select %p22, %s23, %s24
      %p28 = pneg %p22
      %p29 = scmp.eq.s32.totalorder %s13, 7
      %p30 = por %p28, %p29
      %p31 = scmp.ne.s32.totalorder %s23, %s26
      %p32 = scmp.eq.s32.totalorder %s13, 0
      %p33 = por %p31, %p32
      %p34 = scmp.ne.s32.totalorder %s23, %s26
      %p35 = scmp.eq.s32.totalorder %s18, 7
      %p36 = por %p34, %p35
      %p37 = scmp.ne.s32.totalorder %s26, %s27
      %p38 = scmp.eq.s32.totalorder %s18, 0
      %p39 = por %p37, %p38
      %p40 = scmp.ne.s32.totalorder %s26, %s27
      %p41 = scmp.eq.s32.totalorder %s19, 7
      %p42 = por %p40, %p41
      %p44 = scmp.ne.s32.totalorder %s27, %s43
      %p45 = scmp.eq.s32.totalorder %s19, 0
      %p46 = por %p44, %p45
      %s47 = ssub.s32 %s13, %s20
      %p48 = scmp.eq.s32.totalorder %s47, 0
      %s50 = sadd.s32 %s49, 1
      %s51 = scalar_select %p48, %s49, %s50
      %p54 = pneg %p48
      %p55 = scmp.eq.s32.totalorder %s13, 7
      %p56 = por %p54, %p55
      %p57 = scmp.ne.s32.totalorder %s49, %s52
      %p58 = scmp.eq.s32.totalorder %s13, 0
      %p59 = por %p57, %p58
      %p60 = scmp.ne.s32.totalorder %s49, %s52
      %p61 = scmp.eq.s32.totalorder %s18, 7
      %p62 = por %p60, %p61
      %p63 = scmp.ne.s32.totalorder %s52, %s53
      %p64 = scmp.eq.s32.totalorder %s18, 0
      %p65 = por %p63, %p64
      %p66 = scmp.ne.s32.totalorder %s52, %s53
      %p67 = scmp.eq.s32.totalorder %s19, 7
      %p68 = por %p66, %p67
      %p70 = scmp.ne.s32.totalorder %s53, %s69
      %p71 = scmp.eq.s32.totalorder %s19, 0
      %p72 = por %p70, %p71
      %p73 = scmp.le.s32.totalorder 1, %s13
      %p74 = scmp.lt.s32.totalorder %s13, 9
      %p75 = pnand %p73, %p74
      %p76 = pneg %p75
      // Predicated region
      $region9: #{tpu_custom_call.1} parent=5 // pred_check
        _
      $region10: #{tpu_custom_call.1} parent=5 // pred_check_branch
        %78 = sbr.rel (%p75) target = $region12
      $region11: #{tpu_custom_call.1} parent=5 // pred_region
        %s79 = ssub.s32 %s13, 1
      $region12: #{tpu_custom_call.1} parent=5 // pred_fallthru
        _
      %p80 = scmp.lt.s32.totalorder %s13, 8
      // Predicated region
      $region13: #{tpu_custom_call.1} parent=5 // pred_check
        %p81 = pneg %p80
      $region14: #{tpu_custom_call.1} parent=5 // pred_check_branch
        %83 = sbr.rel (%p81) target = $region16
      $region15: #{tpu_custom_call.1} parent=5 // pred_region
        // Predicated region
        $region17: #{tpu_custom_call.1} parent=15 // pred_check
          %p84 = pneg %p33
        $region18: #{tpu_custom_call.1} parent=15 // pred_check_branch
          %86 = sbr.rel (%p84) target = $region20
        $region19: #{tpu_custom_call.1} parent=15 // pred_region
          %s87 = sand.u32 %s23, 1
          %s88 = scalar_lea.sflag [#allocation3], %s87
          %s89 = sand.u32 %s23, 1
          %s90 = smul.addr %s89, 256
          %s91 = scalar_lea.vmem [#allocation2], %s90
          %s92 = smul.u32 4, %s13
          %94 = vsyncadd %s88, 0
          %s95 = smul.addr %s92, 8
          %s96 = smul.addr %s95, 8
          %s97 = scalar_lea.hbm %s0, %s96
          %s98 = sshll.u32 %s97, 4
          %s99 = int_to_ptr.hbm [resolvable:$true] %s98
          %s100 = sshll.u32 %s91, 4
          %s101 = int_to_ptr.vmem [resolvable:$true] %s100
          %106 = dma.hbm_to_vmem [thread:$0]  %s99, 4096, %s101, %s88, 1024, 1024, 64
        $region20: #{tpu_custom_call.1} parent=15 // pred_fallthru
          _
      $region16: #{tpu_custom_call.1} parent=5 // pred_fallthru
        _
      %p107 = scmp.le.s32.totalorder 1, %s13
      %p108 = scmp.lt.s32.totalorder %s13, 9
      %p109 = pnand %p107, %p108
      %p110 = pneg %p109
      // Predicated region
      $region21: #{tpu_custom_call.1} parent=5 // pred_check
        _
      $region22: #{tpu_custom_call.1} parent=5 // pred_check_branch
        %112 = sbr.rel (%p109) target = $region24
      $region23: #{tpu_custom_call.1} parent=5 // pred_region
        %s113 = ssub.s32 %s13, 1
        %s114 = sand.u32 %s26, 1
        %s115 = scalar_lea.sflag [#allocation3], %s114
        %s116 = sand.u32 %s26, 1
        %s117 = smul.addr %s116, 256
        %s118 = scalar_lea.vmem [#allocation2], %s117
        // Predicated region
        $region25: #{tpu_custom_call.1} parent=23 // pred_check
          %p119 = pneg %p39
        $region26: #{tpu_custom_call.1} parent=23 // pred_check_branch
          %121 = sbr.rel (%p119) target = $region28
        $region27: #{tpu_custom_call.1} parent=23 // pred_region
          %123 = dma.done %s115, 4096
        $region28: #{tpu_custom_call.1} parent=23 // pred_fallthru
          _
        %s124 = sand.u32 %s26, 1
        %s125 = scalar_lea.sflag [#allocation3], %s124
        %s126 = sand.u32 %s26, 1
        %s127 = smul.addr %s126, 256
        %s128 = scalar_lea.vmem [#allocation2], %s127
        %p129 = pneg %p39
        %p130 = pneg %p36
        %p131 = pneg %p65
        %p132 = pneg %p62
        %s133 = sand.u32 %s52, 1
        %s134 = scalar_lea.sflag [#allocation4], %s133
        %s135 = sand.u32 %s52, 1
        %s136 = smul.addr %s135, 256
        %s137 = scalar_lea.vmem [#allocation5], %s136
        %s138 = smul.u32 4, %s18
        %s139 = smul.u32 4, %s18
        %v140 = vld [vmem:[%s118] sm:$0xff]
        %v141 = vld [vmem:[%s118 + $0x8] sm:$0xff]
        %v142 = vld [vmem:[%s118 + $0x10] sm:$0xff]
        %v143 = vld [vmem:[%s118 + $0x18] sm:$0xff]
        %v144 = vld [vmem:[%s118 + $0x20] sm:$0xff]
        %v145 = vld [vmem:[%s118 + $0x28] sm:$0xff]
        %v146 = vld [vmem:[%s118 + $0x30] sm:$0xff]
        %v147 = vld [vmem:[%s118 + $0x38] sm:$0xff]
        %v148 = vld [vmem:[%s118 + $0x40] sm:$0xff]
        %v149 = vld [vmem:[%s118 + $0x48] sm:$0xff]
        %v150 = vld [vmem:[%s118 + $0x50] sm:$0xff]
        %v151 = vld [vmem:[%s118 + $0x58] sm:$0xff]
        %v152 = vld [vmem:[%s118 + $0x60] sm:$0xff]
        %v153 = vld [vmem:[%s118 + $0x68] sm:$0xff]
        %v154 = vld [vmem:[%s118 + $0x70] sm:$0xff]
        %v155 = vld [vmem:[%s118 + $0x78] sm:$0xff]
        %v156 = vld [vmem:[%s118 + $0x80] sm:$0xff]
        %v157 = vld [vmem:[%s118 + $0x88] sm:$0xff]
        %v158 = vld [vmem:[%s118 + $0x90] sm:$0xff]
        %v159 = vld [vmem:[%s118 + $0x98] sm:$0xff]
        %v160 = vld [vmem:[%s118 + $0xa0] sm:$0xff]
        %v161 = vld [vmem:[%s118 + $0xa8] sm:$0xff]
        %v162 = vld [vmem:[%s118 + $0xb0] sm:$0xff]
        %v163 = vld [vmem:[%s118 + $0xb8] sm:$0xff]
        %v164 = vld [vmem:[%s118 + $0xc0] sm:$0xff]
        %v165 = vld [vmem:[%s118 + $0xc8] sm:$0xff]
        %v166 = vld [vmem:[%s118 + $0xd0] sm:$0xff]
        %v167 = vld [vmem:[%s118 + $0xd8] sm:$0xff]
        %v168 = vld [vmem:[%s118 + $0xe0] sm:$0xff]
        %v169 = vld [vmem:[%s118 + $0xe8] sm:$0xff]
        %v170 = vld [vmem:[%s118 + $0xf0] sm:$0xff]
        %v171 = vld [vmem:[%s118 + $0xf8] sm:$0xff]
        %v172 = vmul.f32 %v140, 2.0
        %v173 = vmul.f32 %v141, 2.0
        %v174 = vmul.f32 %v142, 2.0
        %v175 = vmul.f32 %v143, 2.0
        %v176 = vmul.f32 %v144, 2.0
        %v177 = vmul.f32 %v145, 2.0
        %v178 = vmul.f32 %v146, 2.0
        %v179 = vmul.f32 %v147, 2.0
        %v180 = vmul.f32 %v148, 2.0
        %v181 = vmul.f32 %v149, 2.0
        %v182 = vmul.f32 %v150, 2.0
        %v183 = vmul.f32 %v151, 2.0
        %v184 = vmul.f32 %v152, 2.0
        %v185 = vmul.f32 %v153, 2.0
        %v186 = vmul.f32 %v154, 2.0
        %v187 = vmul.f32 %v155, 2.0
        %v188 = vmul.f32 %v156, 2.0
        %v189 = vmul.f32 %v157, 2.0
        %v190 = vmul.f32 %v158, 2.0
        %v191 = vmul.f32 %v159, 2.0
        %v192 = vmul.f32 %v160, 2.0
        %v193 = vmul.f32 %v161, 2.0
        %v194 = vmul.f32 %v162, 2.0
        %v195 = vmul.f32 %v163, 2.0
        %v196 = vmul.f32 %v164, 2.0
        %v197 = vmul.f32 %v165, 2.0
        %v198 = vmul.f32 %v166, 2.0
        %v199 = vmul.f32 %v167, 2.0
        %v200 = vmul.f32 %v168, 2.0
        %v201 = vmul.f32 %v169, 2.0
        %v202 = vmul.f32 %v170, 2.0
        %v203 = vmul.f32 %v171, 2.0
        %v204 = vmax.f32 %v172, 0.0
        %v205 = vmax.f32 %v173, 0.0
        %v206 = vmax.f32 %v174, 0.0
        %v207 = vmax.f32 %v175, 0.0
        %v208 = vmax.f32 %v176, 0.0
        %v209 = vmax.f32 %v177, 0.0
        %v210 = vmax.f32 %v178, 0.0
        %v211 = vmax.f32 %v179, 0.0
        %v212 = vmax.f32 %v180, 0.0
        %v213 = vmax.f32 %v181, 0.0
        %v214 = vmax.f32 %v182, 0.0
        %v215 = vmax.f32 %v183, 0.0
        %v216 = vmax.f32 %v184, 0.0
        %v217 = vmax.f32 %v185, 0.0
        %v218 = vmax.f32 %v186, 0.0
        %v219 = vmax.f32 %v187, 0.0
        %v220 = vmax.f32 %v188, 0.0
        %v221 = vmax.f32 %v189, 0.0
        %v222 = vmax.f32 %v190, 0.0
        %v223 = vmax.f32 %v191, 0.0
        %v224 = vmax.f32 %v192, 0.0
        %v225 = vmax.f32 %v193, 0.0
        %v226 = vmax.f32 %v194, 0.0
        %v227 = vmax.f32 %v195, 0.0
        %v228 = vmax.f32 %v196, 0.0
        %v229 = vmax.f32 %v197, 0.0
        %v230 = vmax.f32 %v198, 0.0
        %v231 = vmax.f32 %v199, 0.0
        %v232 = vmax.f32 %v200, 0.0
        %v233 = vmax.f32 %v201, 0.0
        %v234 = vmax.f32 %v202, 0.0
        %v235 = vmax.f32 %v203, 0.0
        %236 = vst [vmem:[%s137] sm:$0xff] %v204
        %237 = vst [vmem:[%s137 + $0x8] sm:$0xff] %v205
        %238 = vst [vmem:[%s137 + $0x10] sm:$0xff] %v206
        %239 = vst [vmem:[%s137 + $0x18] sm:$0xff] %v207
        %240 = vst [vmem:[%s137 + $0x20] sm:$0xff] %v208
        %241 = vst [vmem:[%s137 + $0x28] sm:$0xff] %v209
        %242 = vst [vmem:[%s137 + $0x30] sm:$0xff] %v210
        %243 = vst [vmem:[%s137 + $0x38] sm:$0xff] %v211
        %244 = vst [vmem:[%s137 + $0x40] sm:$0xff] %v212
        %245 = vst [vmem:[%s137 + $0x48] sm:$0xff] %v213
        %246 = vst [vmem:[%s137 + $0x50] sm:$0xff] %v214
        %247 = vst [vmem:[%s137 + $0x58] sm:$0xff] %v215
        %248 = vst [vmem:[%s137 + $0x60] sm:$0xff] %v216
        %249 = vst [vmem:[%s137 + $0x68] sm:$0xff] %v217
        %250 = vst [vmem:[%s137 + $0x70] sm:$0xff] %v218
        %251 = vst [vmem:[%s137 + $0x78] sm:$0xff] %v219
        %252 = vst [vmem:[%s137 + $0x80] sm:$0xff] %v220
        %253 = vst [vmem:[%s137 + $0x88] sm:$0xff] %v221
        %254 = vst [vmem:[%s137 + $0x90] sm:$0xff] %v222
        %255 = vst [vmem:[%s137 + $0x98] sm:$0xff] %v223
        %256 = vst [vmem:[%s137 + $0xa0] sm:$0xff] %v224
        %257 = vst [vmem:[%s137 + $0xa8] sm:$0xff] %v225
        %258 = vst [vmem:[%s137 + $0xb0] sm:$0xff] %v226
        %259 = vst [vmem:[%s137 + $0xb8] sm:$0xff] %v227
        %260 = vst [vmem:[%s137 + $0xc0] sm:$0xff] %v228
        %261 = vst [vmem:[%s137 + $0xc8] sm:$0xff] %v229
        %262 = vst [vmem:[%s137 + $0xd0] sm:$0xff] %v230
        %263 = vst [vmem:[%s137 + $0xd8] sm:$0xff] %v231
        %264 = vst [vmem:[%s137 + $0xe0] sm:$0xff] %v232
        %265 = vst [vmem:[%s137 + $0xe8] sm:$0xff] %v233
        %266 = vst [vmem:[%s137 + $0xf0] sm:$0xff] %v234
        %267 = vst [vmem:[%s137 + $0xf8] sm:$0xff] %v235
        %s268 = sand.u32 %s52, 1
        %s269 = scalar_lea.sflag [#allocation4], %s268
        %s270 = sand.u32 %s52, 1
        %s271 = smul.addr %s270, 256
        %s272 = scalar_lea.vmem [#allocation5], %s271
        // Predicated region
        $region29: #{tpu_custom_call.1} parent=23 // pred_check
          %p273 = pneg %p62
        $region30: #{tpu_custom_call.1} parent=23 // pred_check_branch
          %275 = sbr.rel (%p273) target = $region32
        $region31: #{tpu_custom_call.1} parent=23 // pred_region
          %s276 = smul.u32 4, %s18
          %278 = vsyncadd %s269, 0
          %s279 = smul.addr %s276, 8
          %s280 = smul.addr %s279, 8
          %s281 = scalar_lea.hbm %s1, %s280
          %s282 = sshll.u32 %s272, 4
          %s283 = int_to_ptr.vmem [resolvable:$true] %s282
          %s284 = sshll.u32 %s281, 4
          %s285 = int_to_ptr.hbm [resolvable:$true] %s284
          %290 = dma.vmem_to_hbm [thread:$0]  %s283, 4096, %s285, %s269, 1024, 1024, 64
        $region32: #{tpu_custom_call.1} parent=23 // pred_fallthru
          _
      $region24: #{tpu_custom_call.1} parent=5 // pred_fallthru
        _
      %p291 = scmp.le.s32.totalorder 2, %s13
      // Predicated region
      $region33: #{tpu_custom_call.1} parent=5 // pred_check
        %p292 = pneg %p291
      $region34: #{tpu_custom_call.1} parent=5 // pred_check_branch
        %294 = sbr.rel (%p292) target = $region36
      $region35: #{tpu_custom_call.1} parent=5 // pred_region
        %s295 = ssub.s32 %s13, 2
        // Predicated region
        $region37: #{tpu_custom_call.1} parent=35 // pred_check
          %p296 = pneg %p68
        $region38: #{tpu_custom_call.1} parent=35 // pred_check_branch
          %298 = sbr.rel (%p296) target = $region40
        $region39: #{tpu_custom_call.1} parent=35 // pred_region
          %s299 = sand.u32 %s53, 1
          %s300 = scalar_lea.sflag [#allocation4], %s299
          %s301 = sand.u32 %s53, 1
          %s302 = smul.addr %s301, 256
          %s303 = scalar_lea.vmem [#allocation5], %s302
          %305 = dma.done %s300, 4096
        $region40: #{tpu_custom_call.1} parent=35 // pred_fallthru
          _
      $region36: #{tpu_custom_call.1} parent=5 // pred_fallthru
        _
    $region6: #{tpu_custom_call.1} parent=1 // loop_footer
      %s17 = sadd.s32 1, %s13
    $region7: #{tpu_custom_call.1} parent=1 // loop_footer_branch
      %12 = sbr.rel target = $region3
    $region8: #{tpu_custom_call.1} parent=1 // loop_exit
      _
    %306 = vsyncpa [#allocation3], 1
    %s307 = scalar_lea.sflag [#allocation3], 1
    %308 = vsyncpa %s307, 1
    %309 = vsyncpa [#allocation4], 1
    %s310 = scalar_lea.sflag [#allocation4], 1
    %311 = vsyncpa %s310, 1

</llo_original>
